<compile_context>
chip_gen: v5e
topology: v5e:2x2
jax: 0.10.0
libtpu: 0.0.40
codegen_flags: <defaults>
</compile_context>

<pallas_src>
import functools

import jax
import jax.numpy as jnp
from jax.experimental import pallas as pl
from jax.experimental.pallas import tpu as pltpu

_LANE = 128


def _round_up(x, m):
    return ((x + m - 1) // m) * m


def _pool_sum_max(x, n_chunks, F):
    """x: [TB, n_chunks*F] f32. Tree-reduce the n_chunks chunks of width F.

    Returns (sum, max), each [TB, F]. Uses static lane slices (wide VALU ops
    early in the tree); handles any n_chunks (odd sizes carry the tail chunk).
    """
    xs, xm = x, x
    n = n_chunks
    while n > 1:
        half = n // 2
        w = half * F
        s_new = xs[:, :w] + xs[:, w:2 * w]
        m_new = jnp.maximum(xm[:, :w], xm[:, w:2 * w])
        if n % 2:  # odd: carry the untouched last chunk
            s_new = jnp.concatenate([s_new, xs[:, 2 * w:]], axis=-1)
            m_new = jnp.concatenate([m_new, xm[:, 2 * w:]], axis=-1)
        xs, xm = s_new, m_new
        n = half + (n % 2)
    return xs, xm


def _pool_mlp_kernel(vp_ref, vh_ref, w1_ref, b1_ref, w2_ref, b2_ref, out_ref,
                     *, S, F, task_nums):
    # Inputs arrive lane-dense as [TB, S*F]; upcast so accumulation is f32 even
    # for bf16 inputs. The whole S*F row lives in one block, so the 1/S mean
    # scale below is exact (the sequence axis is never tiled).
    vp = vp_ref[...].astype(jnp.float32)
    vh = vh_ref[...].astype(jnp.float32)
    inv_s = 1.0 / float(S)  # compile-time constant (no vector divide)

    vp_sum, vp_max = _pool_sum_max(vp, S, F)
    vh_sum, vh_max = _pool_sum_max(vh, S, F)

    # Concatenate pooled pieces in vregs (no scratch-VMEM store/reload).
    concat = jnp.concatenate(
        [vp_sum * inv_s, vp_max, vh_sum * inv_s, vh_max], axis=-1)  # [TB, 4F]

    mm_dt = w1_ref.dtype
    # MLP: Linear(dim, dim) -> Tanh -> Dropout(eval: identity)
    #      -> Linear(dim, task_nums_padded) -> Softmax
    h = jnp.dot(concat.astype(mm_dt), w1_ref[...],
                preferred_element_type=jnp.float32)
    h = jnp.tanh(h + b1_ref[...])                      # f32 elementwise (VPU/EUP)

    logits = jnp.dot(h.astype(mm_dt), w2_ref[...],
                     preferred_element_type=jnp.float32)
    logits = logits + b2_ref[...]                      # padded lanes: -1e30 bias

    # Numerically stable softmax over the lane-dense padded last axis.
    m = jnp.max(logits, axis=-1, keepdims=True)
    e = jnp.exp(logits - m)                            # padded lanes -> 0
    denom = jnp.sum(e, axis=-1, keepdims=True)
    r = pl.reciprocal(denom, approx=True)              # EUP slot
    r = r * (2.0 - denom * r)                          # one Newton step
    probs = e * r                                      # [TB, n_pad]

    # Store only the real columns: output HBM traffic is (TB, task_nums).
    out_ref[...] = probs[:, :task_nums].astype(out_ref.dtype)


def _vmem_budget_bytes():
    """Scoped-VMEM budget per generation: ~half of physical VMEM."""
    try:
        cap = int(pltpu.get_tpu_info().vmem_capacity_bytes)
    except Exception:
        cap = 64 << 20  # most conservative (v7x)
    return max(16 << 20, min(cap // 2, 64 << 20))


def _pick_batch_tile(B, in_width, in_itemsize, dim, n_pad, task_nums,
                     mm_itemsize, budget, max_batch_tile=None):
    """Largest sublane-aligned batch tile that fits the VMEM budget.

    Accounts for lane padding of every VMEM block, the double-buffered weight
    blocks, the (TB, task_nums) output buffers, and live f32 temporaries.
    """
    lane_in = _round_up(in_width, _LANE)
    lane_out = _round_up(task_nums, _LANE)
    lane_dim = _round_up(dim, _LANE)
    lane_np = _round_up(n_pad, _LANE)

    # Weight/bias blocks are double-buffered by the pipeline (block index is
    # constant, but Pallas still allocates 2 buffers per input by default).
    weight_bytes = 2 * (dim * lane_dim * mm_itemsize
                        + dim * lane_np * mm_itemsize
                        + 8 * lane_dim * 4
                        + 8 * lane_np * 4)

    # Per batch row: 2 inputs x 2 buffers, output x 2 buffers, plus ~3 f32 rows
    # of live temporaries (concat / h / logits).
    per_row = (2 * 2 * lane_in * in_itemsize
               + 2 * lane_out * 4
               + 3 * max(lane_dim, lane_np) * 4)

    avail = int(budget * 0.75) - weight_bytes
    tb = max(8, avail // per_row)
    tb = max(8, min(4096, (tb // 8) * 8))
    if max_batch_tile is not None:
        tb = max(1, min(tb, max_batch_tile))
    return B if B <= tb else tb


def pooling_and_prediction(v_p, v_h, w1, b1, w2, b2, *,
                           matmul_dtype=jnp.bfloat16, max_batch_tile=None):
    """Forward pass of PoolingAndPrediction (eval-mode dropout).

    v_p, v_h: [B, S, F] (f32 or bf16). w1: [4F, 4F], b1: [4F],
    w2: [4F, task_nums], b2: [task_nums]. Returns [B, task_nums] f32.
    """
    B, S, F = v_p.shape
    dim = w1.shape[0]
    task_nums = w2.shape[1]
    assert dim == 4 * F, "MLP input width must equal 4 * feature width"

    n_pad = max(_LANE, _round_up(task_nums, _LANE))

    # Lane-dense 2nd matmul / softmax: zero-pad w2 columns and give padded
    # logits a huge negative bias so they vanish under softmax.
    w2_pad = jnp.pad(w2, ((0, 0), (0, n_pad - task_nums)))
    b2_pad = jnp.pad(b2, (0, n_pad - task_nums),
                     constant_values=-1e30).reshape(1, n_pad)
    b1_2d = b1.reshape(1, dim)

    # Cast weights to the MXU operand dtype once (biases stay f32).
    w1_op = w1.astype(matmul_dtype)
    w2_op = w2_pad.astype(matmul_dtype)

    # Lane-dense input layout: contiguous reshape is free.
    W = S * F
    vp2 = v_p.reshape(B, W)
    vh2 = v_h.reshape(B, W)

    budget = _vmem_budget_bytes()
    TB = _pick_batch_tile(B, W, jnp.dtype(v_p.dtype).itemsize, dim, n_pad,
                          task_nums, jnp.dtype(matmul_dtype).itemsize, budget,
                          max_batch_tile=max_batch_tile)
    grid = (pl.cdiv(B, TB),)

    kernel = functools.partial(_pool_mlp_kernel, S=S, F=F, task_nums=task_nums)

    def call(dim_sem):
        return pl.pallas_call(
            kernel,
            out_shape=jax.ShapeDtypeStruct((B, task_nums), jnp.float32),
            grid_spec=pltpu.PrefetchScalarGridSpec(
                num_scalar_prefetch=0,
                grid=grid,
                in_specs=[
                    pl.BlockSpec((TB, W), lambda i: (i, 0)),      # v_p tile
                    pl.BlockSpec((TB, W), lambda i: (i, 0)),      # v_h tile
                    pl.BlockSpec((dim, dim), lambda i: (0, 0)),   # resident w1
                    pl.BlockSpec((1, dim), lambda i: (0, 0)),     # b1
                    pl.BlockSpec((dim, n_pad), lambda i: (0, 0)),  # resident w2
                    pl.BlockSpec((1, n_pad), lambda i: (0, 0)),   # b2 (padded)
                ],
                out_specs=pl.BlockSpec((TB, task_nums), lambda i: (i, 0)),
            ),
            compiler_params=pltpu.CompilerParams(
                dimension_semantics=dim_sem,
                vmem_limit_bytes=int(budget),
            ),
        )(vp2, vh2, w1_op, b1_2d, w2_op, b2_pad)

    # v7x: split the batch grid across the two TensorCores explicitly.
    # CORE_PARALLEL may be rejected on single-TC parts / older lowerings, so
    # fall back to plain "parallel" semantics.
    if grid[0] > 1 and hasattr(pltpu, "CORE_PARALLEL"):
        try:
            out = call((pltpu.CORE_PARALLEL,))
            jax.block_until_ready(out)
            return out
        except Exception:
            pass
    return call(("parallel",))


def reference(v_p, v_h, w1, b1, w2, b2):
    vp_mean, vp_max = jnp.mean(v_p, axis=1), jnp.max(v_p, axis=1)
    vh_mean, vh_max = jnp.mean(v_h, axis=1), jnp.max(v_h, axis=1)
    concat = jnp.concatenate([vp_mean, vp_max, vh_mean, vh_max], axis=-1)
    h = jnp.tanh(concat @ w1 + b1)
    logits = h @ w2 + b2
    return jax.nn.softmax(logits, axis=-1)


if __name__ == "__main__":
    key = jax.random.PRNGKey(0)
    B, S, F = 2, 8, 32          # -> dim = 4*F = 128
    dim = 4 * F
    task_nums = 4

    k1, k2, k3, k4, k5, k6, k7, k8 = jax.random.split(key, 8)
    v_p = jax.random.normal(k1, (B, S, F), dtype=jnp.float32)
    v_h = jax.random.normal(k2, (B, S, F), dtype=jnp.float32)

    w1 = jax.random.normal(k3, (dim, dim), dtype=jnp.float32) * 0.05
    b1 = jax.random.normal(k4, (dim,), dtype=jnp.float32) * 0.05
    w2 = jax.random.normal(k5, (dim, task_nums), dtype=jnp.float32) * 0.05
    b2 = jax.random.normal(k6, (task_nums,), dtype=jnp.float32) * 0.05

    ref = reference(v_p, v_h, w1, b1, w2, b2)

    # 1) f32 MXU operand path: tight numerical check.
    out = jax.block_until_ready(
        pooling_and_prediction(v_p, v_h, w1, b1, w2, b2,
                               matmul_dtype=jnp.float32))
    assert out.shape == (B, task_nums)
    assert jnp.allclose(out, ref, atol=1e-4, rtol=1e-4)
    assert jnp.allclose(jnp.sum(out, axis=-1), 1.0, atol=1e-4)

    # 2) Default bf16 MXU operand path (f32 accumulation): looser check.
    out_bf16 = jax.block_until_ready(
        pooling_and_prediction(v_p, v_h, w1, b1, w2, b2))
    assert out_bf16.shape == (B, task_nums)
    assert jnp.allclose(out_bf16, ref, atol=2e-2, rtol=2e-2)

    # 3) bf16 inputs (HBM-read traffic halved), f32 accumulation in-kernel.
    vp_bf, vh_bf = v_p.astype(jnp.bfloat16), v_h.astype(jnp.bfloat16)
    ref_bf_in = reference(vp_bf.astype(jnp.float32), vh_bf.astype(jnp.float32),
                          w1, b1, w2, b2)
    out_bf_in = jax.block_until_ready(
        pooling_and_prediction(vp_bf, vh_bf, w1, b1, w2, b2))
    assert jnp.allclose(out_bf_in, ref_bf_in, atol=2e-2, rtol=2e-2)

    # 4) Multi-tile grid with a partial final batch tile (B % TB != 0):
    #    confirms padded rows never contaminate valid rows.
    B2 = 20
    v_p2 = jax.random.normal(k7, (B2, S, F), dtype=jnp.float32)
    v_h2 = jax.random.normal(k8, (B2, S, F), dtype=jnp.float32)
    ref2 = reference(v_p2, v_h2, w1, b1, w2, b2)
    out2 = jax.block_until_ready(
        pooling_and_prediction(v_p2, v_h2, w1, b1, w2, b2,
                               matmul_dtype=jnp.float32, max_batch_tile=8))
    assert out2.shape == (B2, task_nums)
    assert jnp.allclose(out2, ref2, atol=1e-4, rtol=1e-4)

    print("KERNEL_OK")
</pallas_src>

<mosaic_0001>
module attributes {stable_mosaic.version = 11 : i64} {
  func.func @_pool_mlp_kernel(%arg0: i32, %arg1: memref<2x256xf32, #tpu.memory_space<vmem>>, %arg2: memref<2x256xf32, #tpu.memory_space<vmem>>, %arg3: memref<128x128xf32, #tpu.memory_space<vmem>>, %arg4: memref<1x128xf32, #tpu.memory_space<vmem>>, %arg5: memref<128x128xf32, #tpu.memory_space<vmem>>, %arg6: memref<1x128xf32, #tpu.memory_space<vmem>>, %arg7: memref<2x4xf32, #tpu.memory_space<vmem>>) attributes {dimension_semantics = [#tpu.dimension_semantics<parallel>], iteration_bounds = array<i64: 1>, scalar_prefetch = 0 : i64, scratch_operands = 0 : i64, tpu.core_type = #tpu.core_type<tc>, window_params = [{transform_indices = @transform_0, window_bounds = array<i64: 2, 256>}, {transform_indices = @transform_1, window_bounds = array<i64: 2, 256>}, {pipeline_mode = #tpu.pipeline_mode<synchronous>, transform_indices = @transform_2, window_bounds = array<i64: 128, 128>}, {pipeline_mode = #tpu.pipeline_mode<synchronous>, transform_indices = @transform_3, window_bounds = array<i64: 1, 128>}, {pipeline_mode = #tpu.pipeline_mode<synchronous>, transform_indices = @transform_4, window_bounds = array<i64: 128, 128>}, {pipeline_mode = #tpu.pipeline_mode<synchronous>, transform_indices = @transform_5, window_bounds = array<i64: 1, 128>}, {transform_indices = @transform_6, window_bounds = array<i64: 2, 4>}]} {
    %c0 = arith.constant 0 : index
    %c0_0 = arith.constant 0 : index
    %0 = vector.load %arg1[%c0, %c0_0] : memref<2x256xf32, #tpu.memory_space<vmem>>, vector<2x256xf32>
    %c0_1 = arith.constant 0 : index
    %c0_2 = arith.constant 0 : index
    %1 = vector.load %arg2[%c0_1, %c0_2] : memref<2x256xf32, #tpu.memory_space<vmem>>, vector<2x256xf32>
    %2 = vector.extract_strided_slice %0 {offsets = [0, 0], sizes = [2, 128], strides = [1, 1]} : vector<2x256xf32> to vector<2x128xf32>
    %3 = vector.extract_strided_slice %0 {offsets = [0, 128], sizes = [2, 128], strides = [1, 1]} : vector<2x256xf32> to vector<2x128xf32>
    %4 = arith.addf %2, %3 : vector<2x128xf32>
    %5 = vector.extract_strided_slice %0 {offsets = [0, 0], sizes = [2, 128], strides = [1, 1]} : vector<2x256xf32> to vector<2x128xf32>
    %6 = vector.extract_strided_slice %0 {offsets = [0, 128], sizes = [2, 128], strides = [1, 1]} : vector<2x256xf32> to vector<2x128xf32>
    %7 = arith.maximumf %5, %6 : vector<2x128xf32>
    %8 = vector.extract_strided_slice %4 {offsets = [0, 0], sizes = [2, 64], strides = [1, 1]} : vector<2x128xf32> to vector<2x64xf32>
    %9 = vector.extract_strided_slice %4 {offsets = [0, 64], sizes = [2, 64], strides = [1, 1]} : vector<2x128xf32> to vector<2x64xf32>
    %10 = arith.addf %8, %9 : vector<2x64xf32>
    %11 = vector.extract_strided_slice %7 {offsets = [0, 0], sizes = [2, 64], strides = [1, 1]} : vector<2x128xf32> to vector<2x64xf32>
    %12 = vector.extract_strided_slice %7 {offsets = [0, 64], sizes = [2, 64], strides = [1, 1]} : vector<2x128xf32> to vector<2x64xf32>
    %13 = arith.maximumf %11, %12 : vector<2x64xf32>
    %14 = vector.extract_strided_slice %10 {offsets = [0, 0], sizes = [2, 32], strides = [1, 1]} : vector<2x64xf32> to vector<2x32xf32>
    %15 = vector.extract_strided_slice %10 {offsets = [0, 32], sizes = [2, 32], strides = [1, 1]} : vector<2x64xf32> to vector<2x32xf32>
    %16 = arith.addf %14, %15 : vector<2x32xf32>
    %17 = vector.extract_strided_slice %13 {offsets = [0, 0], sizes = [2, 32], strides = [1, 1]} : vector<2x64xf32> to vector<2x32xf32>
    %18 = vector.extract_strided_slice %13 {offsets = [0, 32], sizes = [2, 32], strides = [1, 1]} : vector<2x64xf32> to vector<2x32xf32>
    %19 = arith.maximumf %17, %18 : vector<2x32xf32>
    %20 = vector.extract_strided_slice %1 {offsets = [0, 0], sizes = [2, 128], strides = [1, 1]} : vector<2x256xf32> to vector<2x128xf32>
    %21 = vector.extract_strided_slice %1 {offsets = [0, 128], sizes = [2, 128], strides = [1, 1]} : vector<2x256xf32> to vector<2x128xf32>
    %22 = arith.addf %20, %21 : vector<2x128xf32>
    %23 = vector.extract_strided_slice %1 {offsets = [0, 0], sizes = [2, 128], strides = [1, 1]} : vector<2x256xf32> to vector<2x128xf32>
    %24 = vector.extract_strided_slice %1 {offsets = [0, 128], sizes = [2, 128], strides = [1, 1]} : vector<2x256xf32> to vector<2x128xf32>
    %25 = arith.maximumf %23, %24 : vector<2x128xf32>
    %26 = vector.extract_strided_slice %22 {offsets = [0, 0], sizes = [2, 64], strides = [1, 1]} : vector<2x128xf32> to vector<2x64xf32>
    %27 = vector.extract_strided_slice %22 {offsets = [0, 64], sizes = [2, 64], strides = [1, 1]} : vector<2x128xf32> to vector<2x64xf32>
    %28 = arith.addf %26, %27 : vector<2x64xf32>
    %29 = vector.extract_strided_slice %25 {offsets = [0, 0], sizes = [2, 64], strides = [1, 1]} : vector<2x128xf32> to vector<2x64xf32>
    %30 = vector.extract_strided_slice %25 {offsets = [0, 64], sizes = [2, 64], strides = [1, 1]} : vector<2x128xf32> to vector<2x64xf32>
    %31 = arith.maximumf %29, %30 : vector<2x64xf32>
    %32 = vector.extract_strided_slice %28 {offsets = [0, 0], sizes = [2, 32], strides = [1, 1]} : vector<2x64xf32> to vector<2x32xf32>
    %33 = vector.extract_strided_slice %28 {offsets = [0, 32], sizes = [2, 32], strides = [1, 1]} : vector<2x64xf32> to vector<2x32xf32>
    %34 = arith.addf %32, %33 : vector<2x32xf32>
    %35 = vector.extract_strided_slice %31 {offsets = [0, 0], sizes = [2, 32], strides = [1, 1]} : vector<2x64xf32> to vector<2x32xf32>
    %36 = vector.extract_strided_slice %31 {offsets = [0, 32], sizes = [2, 32], strides = [1, 1]} : vector<2x64xf32> to vector<2x32xf32>
    %37 = arith.maximumf %35, %36 : vector<2x32xf32>
    %cst = arith.constant 1.250000e-01 : f32
    %38 = vector.broadcast %cst : f32 to vector<2x32xf32>
    %39 = arith.mulf %16, %38 : vector<2x32xf32>
    %cst_3 = arith.constant 1.250000e-01 : f32
    %40 = vector.broadcast %cst_3 : f32 to vector<2x32xf32>
    %41 = arith.mulf %34, %40 : vector<2x32xf32>
    %42 = tpu.concatenate %39, %19, %41, %37 in 1 : vector<2x32xf32>, vector<2x32xf32>, vector<2x32xf32>, vector<2x32xf32> -> vector<2x128xf32>
    %c0_4 = arith.constant 0 : index
    %c0_5 = arith.constant 0 : index
    %43 = vector.load %arg3[%c0_4, %c0_5] : memref<128x128xf32, #tpu.memory_space<vmem>>, vector<128x128xf32>
    %cst_6 = arith.constant dense<0.000000e+00> : vector<2x128xf32>
    %44 = tpu.matmul %42, %43, %cst_6 {dimension_numbers = #tpu.dot_dimension_numbers<[1], [0], [0], [1], [0, 0, 1, 1], [], []>} : vector<2x128xf32>, vector<128x128xf32>, vector<2x128xf32> -> vector<2x128xf32>
    %c0_7 = arith.constant 0 : index
    %c0_8 = arith.constant 0 : index
    %45 = vector.load %arg4[%c0_7, %c0_8] : memref<1x128xf32, #tpu.memory_space<vmem>>, vector<1x128xf32>
    %46 = vector.broadcast %45 : vector<1x128xf32> to vector<2x128xf32>
    %47 = arith.addf %44, %46 : vector<2x128xf32>
    %48 = math.tanh %47 : vector<2x128xf32>
    %c0_9 = arith.constant 0 : index
    %c0_10 = arith.constant 0 : index
    %49 = vector.load %arg5[%c0_9, %c0_10] : memref<128x128xf32, #tpu.memory_space<vmem>>, vector<128x128xf32>
    %cst_11 = arith.constant dense<0.000000e+00> : vector<2x128xf32>
    %50 = tpu.matmul %48, %49, %cst_11 {dimension_numbers = #tpu.dot_dimension_numbers<[1], [0], [0], [1], [0, 0, 1, 1], [], []>} : vector<2x128xf32>, vector<128x128xf32>, vector<2x128xf32> -> vector<2x128xf32>
    %c0_12 = arith.constant 0 : index
    %c0_13 = arith.constant 0 : index
    %51 = vector.load %arg6[%c0_12, %c0_13] : memref<1x128xf32, #tpu.memory_space<vmem>>, vector<1x128xf32>
    %52 = vector.broadcast %51 : vector<1x128xf32> to vector<2x128xf32>
    %53 = arith.addf %50, %52 : vector<2x128xf32>
    %cst_14 = arith.constant dense<0xFF800000> : vector<2xf32>
    %54 = vector.multi_reduction <maximumf>, %53, %cst_14 [1] : vector<2x128xf32> to vector<2xf32>
    %55 = vector.shape_cast %54 : vector<2xf32> to vector<2x1xf32>
    %56 = vector.broadcast %55 : vector<2x1xf32> to vector<2x128xf32>
    %57 = arith.subf %53, %56 : vector<2x128xf32>
    %58 = math.exp %57 : vector<2x128xf32>
    %cst_15 = arith.constant dense<0.000000e+00> : vector<2xf32>
    %59 = vector.multi_reduction <add>, %58, %cst_15 [1] : vector<2x128xf32> to vector<2xf32>
    %60 = vector.shape_cast %59 : vector<2xf32> to vector<2x1xf32>
    %61 = tpu.reciprocal %60 {approx = true} : vector<2x1xf32> -> vector<2x1xf32>
    %62 = arith.mulf %60, %61 : vector<2x1xf32>
    %cst_16 = arith.constant 2.000000e+00 : f32
    %63 = vector.broadcast %cst_16 : f32 to vector<2x1xf32>
    %64 = arith.subf %63, %62 : vector<2x1xf32>
    %65 = arith.mulf %61, %64 : vector<2x1xf32>
    %66 = vector.broadcast %65 : vector<2x1xf32> to vector<2x128xf32>
    %67 = arith.mulf %58, %66 : vector<2x128xf32>
    %68 = vector.extract_strided_slice %67 {offsets = [0, 0], sizes = [2, 4], strides = [1, 1]} : vector<2x128xf32> to vector<2x4xf32>
    %c0_17 = arith.constant 0 : index
    %c0_18 = arith.constant 0 : index
    %69 = vector.load %arg7[%c0_17, %c0_18] : memref<2x4xf32, #tpu.memory_space<vmem>>, vector<2x4xf32>
    tpu.vector_store %arg7[%c0_17, %c0_18], %68 {strides = array<i32>} : memref<2x4xf32, #tpu.memory_space<vmem>>, vector<2x4xf32>,
    return
  }
  func.func @transform_0(%arg0: i32) -> (i32, i32) {
    %c0_i32 = arith.constant 0 : i32
    %c0_i32_0 = arith.constant 0 : i32
    return %arg0, %c0_i32 : i32, i32
  }
  func.func @transform_1(%arg0: i32) -> (i32, i32) {
    %c0_i32 = arith.constant 0 : i32
    %c0_i32_0 = arith.constant 0 : i32
    return %arg0, %c0_i32 : i32, i32
  }
  func.func @transform_2(%arg0: i32) -> (i32, i32) {
    %c0_i32 = arith.constant 0 : i32
    %c0_i32_0 = arith.constant 0 : i32
    %c0_i32_1 = arith.constant 0 : i32
    return %c0_i32, %c0_i32_0 : i32, i32
  }
  func.func @transform_3(%arg0: i32) -> (i32, i32) {
    %c0_i32 = arith.constant 0 : i32
    %c0_i32_0 = arith.constant 0 : i32
    %c0_i32_1 = arith.constant 0 : i32
    return %c0_i32, %c0_i32_0 : i32, i32
  }
  func.func @transform_4(%arg0: i32) -> (i32, i32) {
    %c0_i32 = arith.constant 0 : i32
    %c0_i32_0 = arith.constant 0 : i32
    %c0_i32_1 = arith.constant 0 : i32
    return %c0_i32, %c0_i32_0 : i32, i32
  }
  func.func @transform_5(%arg0: i32) -> (i32, i32) {
    %c0_i32 = arith.constant 0 : i32
    %c0_i32_0 = arith.constant 0 : i32
    %c0_i32_1 = arith.constant 0 : i32
    return %c0_i32, %c0_i32_0 : i32, i32
  }
  func.func @transform_6(%arg0: i32) -> (i32, i32) {
    %c0_i32 = arith.constant 0 : i32
    %c0_i32_0 = arith.constant 0 : i32
    return %arg0, %c0_i32 : i32, i32
  }
}

</mosaic_0001>

<llo_original>
// kernel: tpu_custom_call.1
$region0: #{tpu_custom_call.1}
  #allocation0 [shape = 'u32[]', space=smem, size = 0x4, offset = 0x4, fixed_abs, tag = 'smem constant byte address 0x4 - core index']
  #allocation1 [shape = 'u32[72,128]{1,0:T(1,128)}', space=vmem, size = 0x9000, scoped, tag = 'internal scratch']
  %s0 = inlined_call_operand.hbm [shape: f32[2,256], index: 0, kind: input, shape index: {}]
  %s1 = inlined_call_operand.hbm [shape: f32[2,256], index: 1, kind: input, shape index: {}]
  %s2 = inlined_call_operand.hbm [shape: f32[128,128], index: 2, kind: input, shape index: {}]
  %s3 = inlined_call_operand.vmem [shape: f32[1,128], index: 3, kind: input, shape index: {}]
  %s4 = inlined_call_operand.hbm [shape: f32[128,128], index: 4, kind: input, shape index: {}]
  %s5 = inlined_call_operand.vmem [shape: f32[1,128], index: 5, kind: input, shape index: {}]
  %s6 = inlined_call_operand.hbm [shape: f32[2,4], index: 6, kind: output, shape index: {}]
  %s7 = sld [smem:[#allocation0]]
  $region50: #{tpu_custom_call.1} parent=0
    _
  %s9 = ssub.s32 1, %s7
  %s10 = scalar_select 0, %s9, %s7
  $region1: #{tpu_custom_call.1} parent=0
    #allocation2 [shape = 'u8[2048]{0}', space=vmem, size = 0x800, scoped, tag = 'input window, operand 0, single buffered']
    #allocation3 [shape = 's32[1]{0}', space=sflag, size = 0x4, scoped, tag = 'scoped memory for tpu_custom_call.1']
    #allocation4 [shape = 's32[1]{0}', space=sflag, size = 0x4, scoped, tag = 'scoped memory for tpu_custom_call.1']
    #allocation5 [shape = 'u8[2048]{0}', space=vmem, size = 0x800, scoped, tag = 'input window, operand 1, single buffered']
    #allocation6 [shape = 's32[1]{0}', space=sflag, size = 0x4, scoped, tag = 'scoped memory for tpu_custom_call.1']
    #allocation7 [shape = 'u8[65536]{0}', space=vmem, size = 0x10000, scoped, tag = 'input window, operand 2, single buffered']
    #allocation8 [shape = 'u8[65536]{0}', space=vmem, size = 0x10000, scoped, tag = 'input window, operand 4, single buffered']
    #allocation9 [shape = 's32[1]{0}', space=sflag, size = 0x4, scoped, tag = 'scoped memory for tpu_custom_call.1']
    #allocation10 [shape = 'u8[1024]{0}', space=vmem, size = 0x400, scoped, tag = 'output window, operand 0, single buffered']
    %11 = vsyncpa [#allocation3], 0
    %12 = vsyncpa [#allocation6], 0
    %13 = vsyncpa [#allocation9], 0
    %14 = vsyncpa [#allocation4], 0
    // Predicated region
    $region2: #{tpu_custom_call.1} parent=1 // pred_check
      _
    $region3: #{tpu_custom_call.1} parent=1 // pred_check_branch
      %16 = sbr.rel (0) target = $region5
    $region4: #{tpu_custom_call.1} parent=1 // pred_region
      %18 = vsyncadd [#allocation3], 0
      %s20 = sshll.u32 %s0, 4
      %s21 = int_to_ptr.hbm [resolvable:$true] %s20
      %s22 = sshll.u32 [#allocation2], 4
      %s23 = int_to_ptr.vmem [resolvable:$true] %s22
      %25 = dma.hbm_to_vmem [thread:$0]  %s21, 64, %s23, [#allocation3]
    $region5: #{tpu_custom_call.1} parent=1 // pred_fallthru
      _
    // Predicated region
    $region6: #{tpu_custom_call.1} parent=1 // pred_check
      _
    $region7: #{tpu_custom_call.1} parent=1 // pred_check_branch
      %27 = sbr.rel (0) target = $region9
    $region8: #{tpu_custom_call.1} parent=1 // pred_region
      %29 = vsyncadd [#allocation6], 0
      %s31 = sshll.u32 %s1, 4
      %s32 = int_to_ptr.hbm [resolvable:$true] %s31
      %s33 = sshll.u32 [#allocation5], 4
      %s34 = int_to_ptr.vmem [resolvable:$true] %s33
      %36 = dma.hbm_to_vmem [thread:$0]  %s32, 64, %s34, [#allocation6]
    $region9: #{tpu_custom_call.1} parent=1 // pred_fallthru
      _
    // Predicated region
    $region10: #{tpu_custom_call.1} parent=1 // pred_check
      _
    $region11: #{tpu_custom_call.1} parent=1 // pred_check_branch
      %38 = sbr.rel (0) target = $region13
    $region12: #{tpu_custom_call.1} parent=1 // pred_region
      %40 = vsyncadd [#allocation6], 0
      %s41 = sshll.u32 %s2, 4
      %s42 = int_to_ptr.hbm [resolvable:$true] %s41
      %s43 = sshll.u32 [#allocation7], 4
      %s44 = int_to_ptr.vmem [resolvable:$true] %s43
      %49 = dma.hbm_to_vmem [thread:$0]  %s42, 2048, %s44, [#allocation6], 128, 128, 8
    $region13: #{tpu_custom_call.1} parent=1 // pred_fallthru
      _
    // Predicated region
    $region14: #{tpu_custom_call.1} parent=1 // pred_check
      _
    $region15: #{tpu_custom_call.1} parent=1 // pred_check_branch
      %51 = sbr.rel (0) target = $region17
    $region16: #{tpu_custom_call.1} parent=1 // pred_region
      _
    $region17: #{tpu_custom_call.1} parent=1 // pred_fallthru
      _
    // Predicated region
    $region18: #{tpu_custom_call.1} parent=1 // pred_check
      _
    $region19: #{tpu_custom_call.1} parent=1 // pred_check_branch
      %53 = sbr.rel (0) target = $region21
    $region20: #{tpu_custom_call.1} parent=1 // pred_region
      %55 = vsyncadd [#allocation9], 0
      %s56 = sshll.u32 %s4, 4
      %s57 = int_to_ptr.hbm [resolvable:$true] %s56
      %s58 = sshll.u32 [#allocation8], 4
      %s59 = int_to_ptr.vmem [resolvable:$true] %s58
      %64 = dma.hbm_to_vmem [thread:$0]  %s57, 2048, %s59, [#allocation9], 128, 128, 8
    $region21: #{tpu_custom_call.1} parent=1 // pred_fallthru
      _
    // Predicated region
    $region22: #{tpu_custom_call.1} parent=1 // pred_check
      _
    $region23: #{tpu_custom_call.1} parent=1 // pred_check_branch
      %66 = sbr.rel (0) target = $region25
    $region24: #{tpu_custom_call.1} parent=1 // pred_region
      _
    $region25: #{tpu_custom_call.1} parent=1 // pred_fallthru
      _
    // Predicated region
    $region26: #{tpu_custom_call.1} parent=1 // pred_check
      _
    $region27: #{tpu_custom_call.1} parent=1 // pred_check_branch
      %68 = sbr.rel (0) target = $region29
    $region28: #{tpu_custom_call.1} parent=1 // pred_region
      %70 = dma.done [#allocation3], 64
    $region29: #{tpu_custom_call.1} parent=1 // pred_fallthru
      _
    // Predicated region
    $region30: #{tpu_custom_call.1} parent=1 // pred_check
      _
    $region31: #{tpu_custom_call.1} parent=1 // pred_check_branch
      %72 = sbr.rel (0) target = $region33
    $region32: #{tpu_custom_call.1} parent=1 // pred_region
      %74 = dma.done [#allocation6], 64
    $region33: #{tpu_custom_call.1} parent=1 // pred_fallthru
      _
    // Predicated region
    $region34: #{tpu_custom_call.1} parent=1 // pred_check
      _
    $region35: #{tpu_custom_call.1} parent=1 // pred_check_branch
      %76 = sbr.rel (0) target = $region37
    $region36: #{tpu_custom_call.1} parent=1 // pred_region
      %78 = dma.done [#allocation6], 2048
    $region37: #{tpu_custom_call.1} parent=1 // pred_fallthru
      _
    // Predicated region
    $region38: #{tpu_custom_call.1} parent=1 // pred_check
      _
    $region39: #{tpu_custom_call.1} parent=1 // pred_check_branch
      %80 = sbr.rel (0) target = $region41
    $region40: #{tpu_custom_call.1} parent=1 // pred_region
      %82 = dma.done [#allocation9], 2048
    $region41: #{tpu_custom_call.1} parent=1 // pred_fallthru
      _
    %v83 = vld [vmem:[#allocation2] sm:$0xf]
    %v84 = vld [vmem:[#allocation5] sm:$0xf]
    %v86 = vrot.slane %v83, 2
    %v88 = vadd.f32 %v83, %v86
    %v89 = vmax.f32 %v83, %v86
    %91 = vrot.lane.b32.xlu0 %v88, 64
    %v92 = vpop.permute.xlu0 %91
    %v94 = vadd.f32 %v88, %v92
    %96 = vrot.lane.b32.xlu0 %v89, 64
    %v97 = vpop.permute.xlu0 %96
    %v99 = vmax.f32 %v89, %v97
    %101 = vrot.lane.b32.xlu0 %v94, 96
    %v102 = vpop.permute.xlu0 %101
    %v104 = vadd.f32 %v94, %v102
    %106 = vrot.lane.b32.xlu0 %v99, 96
    %v107 = vpop.permute.xlu0 %106
    %v109 = vmax.f32 %v99, %v107
    %v111 = vrot.slane %v84, 2
    %v113 = vadd.f32 %v84, %v111
    %v114 = vmax.f32 %v84, %v111
    %116 = vrot.lane.b32.xlu0 %v113, 64
    %v117 = vpop.permute.xlu0 %116
    %v119 = vadd.f32 %v113, %v117
    %121 = vrot.lane.b32.xlu0 %v114, 64
    %v122 = vpop.permute.xlu0 %121
    %v124 = vmax.f32 %v114, %v122
    %126 = vrot.lane.b32.xlu0 %v119, 96
    %v127 = vpop.permute.xlu0 %126
    %v129 = vadd.f32 %v119, %v127
    %131 = vrot.lane.b32.xlu0 %v124, 96
    %v132 = vpop.permute.xlu0 %131
    %v134 = vmax.f32 %v124, %v132
    %v135 = vmul.f32 %v104, 0.125
    %v136 = vmul.f32 %v129, 0.125
    %138 = vst [vmem:[#allocation1] ss:$4 sm:$0xff] %v109
    %v139 = vld.sshfl [vmem:[#allocation1] sm:$0xff pattern:$0x73625140]
    %140 = vrot.lane.b32.xlu0 %v139, 32
    %v141 = vpop.permute.xlu0 %140
    %144 = vst [vmem:[#allocation1] ss:$4 sm:$0xff] %v136
    %v145 = vld.sshfl [vmem:[#allocation1] sm:$0xff pattern:$0x73625140]
    %146 = vrot.lane.b32.xlu0 %v145, 64
    %v147 = vpop.permute.xlu0 %146
    %150 = vst [vmem:[#allocation1] ss:$4 sm:$0xff] %v134
    %v151 = vld.sshfl [vmem:[#allocation1] sm:$0xff pattern:$0x73625140]
    %152 = vrot.lane.b32.xlu0 %v151, 96
    %v153 = vpop.permute.xlu0 %152
    %vm155 = vcmask 261120
    %v156 = vsel %vm155, %v135, %v141
    %vm157 = vcmask 523264
    %v158 = vsel %vm157, %v156, %v147
    %vm159 = vcmask 785408
    %v160 = vsel %vm159, %v158, %v153
    %v161 = vld [vmem:[#allocation7] sm:$0xff]
    %v162 = vld [vmem:[#allocation7 + $0x8] sm:$0xff]
    %v163 = vld [vmem:[#allocation7 + $0x10] sm:$0xff]
    %v164 = vld [vmem:[#allocation7 + $0x18] sm:$0xff]
    %v165 = vld [vmem:[#allocation7 + $0x20] sm:$0xff]
    %v166 = vld [vmem:[#allocation7 + $0x28] sm:$0xff]
    %v167 = vld [vmem:[#allocation7 + $0x30] sm:$0xff]
    %v168 = vld [vmem:[#allocation7 + $0x38] sm:$0xff]
    %v169 = vld [vmem:[#allocation7 + $0x40] sm:$0xff]
    %v170 = vld [vmem:[#allocation7 + $0x48] sm:$0xff]
    %v171 = vld [vmem:[#allocation7 + $0x50] sm:$0xff]
    %v172 = vld [vmem:[#allocation7 + $0x58] sm:$0xff]
    %v173 = vld [vmem:[#allocation7 + $0x60] sm:$0xff]
    %v174 = vld [vmem:[#allocation7 + $0x68] sm:$0xff]
    %v175 = vld [vmem:[#allocation7 + $0x70] sm:$0xff]
    %v176 = vld [vmem:[#allocation7 + $0x78] sm:$0xff]
    %v177 = vld [vmem:[%s3] sm:$0x1]
    %v179 = vperm.slane %v177, 0
    %181 = vmatpush.msra.mxu0 %v176
    %182 = vmatpush.msra.mxu0 %v175
    %183 = vmatpush.msra.mxu0 %v174
    %184 = vmatpush.msra.mxu0 %v173
    %185 = vmatpush.msra.mxu0 %v172
    %186 = vmatpush.msra.mxu0 %v171
    %187 = vmatpush.msra.mxu0 %v170
    %188 = vmatpush.msra.mxu0 %v169
    %189 = vmatpush.msra.mxu0 %v168
    %190 = vmatpush.msra.mxu0 %v167
    %191 = vmatpush.msra.mxu0 %v166
    %192 = vmatpush.msra.mxu0 %v165
    %193 = vmatpush.msra.mxu0 %v164
    %194 = vmatpush.msra.mxu0 %v163
    %195 = vmatpush.msra.mxu0 %v162
    %196 = vmatpush.msra.mxu0 %v161
    %197 = vmatmul.f32.gmra.mxu0 %v160
    %v198 = vpop.f32.mrf.mxu0
    %v199 = vadd.f32 %v179, %v198
    %200 = vdwg.mxu0
    %v201 = vtanh.pop %v199
    %v202 = vld [vmem:[#allocation8] sm:$0xff]
    %v203 = vld [vmem:[#allocation8 + $0x8] sm:$0xff]
    %v204 = vld [vmem:[#allocation8 + $0x10] sm:$0xff]
    %v205 = vld [vmem:[#allocation8 + $0x18] sm:$0xff]
    %v206 = vld [vmem:[#allocation8 + $0x20] sm:$0xff]
    %v207 = vld [vmem:[#allocation8 + $0x28] sm:$0xff]
    %v208 = vld [vmem:[#allocation8 + $0x30] sm:$0xff]
    %v209 = vld [vmem:[#allocation8 + $0x38] sm:$0xff]
    %v210 = vld [vmem:[#allocation8 + $0x40] sm:$0xff]
    %v211 = vld [vmem:[#allocation8 + $0x48] sm:$0xff]
    %v212 = vld [vmem:[#allocation8 + $0x50] sm:$0xff]
    %v213 = vld [vmem:[#allocation8 + $0x58] sm:$0xff]
    %v214 = vld [vmem:[#allocation8 + $0x60] sm:$0xff]
    %v215 = vld [vmem:[#allocation8 + $0x68] sm:$0xff]
    %v216 = vld [vmem:[#allocation8 + $0x70] sm:$0xff]
    %v217 = vld [vmem:[#allocation8 + $0x78] sm:$0xff]
    %v218 = vld [vmem:[%s5] sm:$0x1]
    %v220 = vperm.slane %v218, 0
    %222 = vmatpush.msra.mxu0 %v217
    %223 = vmatpush.msra.mxu0 %v216
    %224 = vmatpush.msra.mxu0 %v215
    %225 = vmatpush.msra.mxu0 %v214
    %226 = vmatpush.msra.mxu0 %v213
    %227 = vmatpush.msra.mxu0 %v212
    %228 = vmatpush.msra.mxu0 %v211
    %229 = vmatpush.msra.mxu0 %v210
    %230 = vmatpush.msra.mxu0 %v209
    %231 = vmatpush.msra.mxu0 %v208
    %232 = vmatpush.msra.mxu0 %v207
    %233 = vmatpush.msra.mxu0 %v206
    %234 = vmatpush.msra.mxu0 %v205
    %235 = vmatpush.msra.mxu0 %v204
    %236 = vmatpush.msra.mxu0 %v203
    %237 = vmatpush.msra.mxu0 %v202
    %238 = vmatmul.f32.gmra.mxu0 %v201
    %v239 = vpop.f32.mrf.mxu0
    %v240 = vadd.f32 %v220, %v239
    %241 = vdwg.mxu0
    %vm242 = vcmask 1041408
    %v243 = vsel %vm242, %v240, -inf
    %244 = vmax.xlane.f32.xlu0 %v243
    %v245 = vpop.xlane.xlu0 %244
    %v246 = vsub.f32 %v240, %v245
    %v247 = vmul.f32 %v246, 1.442695
    %v248 = vpow.pop %v247
    %v249 = vsel %vm242, %v248, 0.0
    %250 = vadd.xlane.f32.xlu0 %v249
    %v251 = vpop.xlane.xlu0 %250
    %v252 = vrcp.pop %v251
    %v253 = vmul.f32 %v251, %v252
    %v254 = vsub.f32 2.0, %v253
    %v255 = vmul.f32 %v252, %v254
    %v256 = vmul.f32 %v248, %v255
    %vm257 = vcmask 25600
    %258 = vst.msk [vmem:[#allocation10] sm:$0x3] %vm257, %v256
    // Predicated region
    $region42: #{tpu_custom_call.1} parent=1 // pred_check
      _
    $region43: #{tpu_custom_call.1} parent=1 // pred_check_branch
      %260 = sbr.rel (0) target = $region45
    $region44: #{tpu_custom_call.1} parent=1 // pred_region
      %262 = vsyncadd [#allocation4], 0
      %s264 = sshll.u32 [#allocation10], 4
      %s265 = int_to_ptr.vmem [resolvable:$true] %s264
      %s266 = sshll.u32 %s6, 4
      %s267 = int_to_ptr.hbm [resolvable:$true] %s266
      %269 = dma.vmem_to_hbm [thread:$0]  %s265, 32, %s267, [#allocation4]
    $region45: #{tpu_custom_call.1} parent=1 // pred_fallthru
      _
    // Predicated region
    $region46: #{tpu_custom_call.1} parent=1 // pred_check
      _
    $region47: #{tpu_custom_call.1} parent=1 // pred_check_branch
      %271 = sbr.rel (0) target = $region49
    $region48: #{tpu_custom_call.1} parent=1 // pred_region
      %273 = dma.done [#allocation4], 32
    $region49: #{tpu_custom_call.1} parent=1 // pred_fallthru
      _
    %274 = vsyncpa [#allocation3], 1
    %275 = vsyncpa [#allocation6], 1
    %276 = vsyncpa [#allocation9], 1
    %277 = vsyncpa [#allocation4], 1

</llo_original>
